<compile_context>
chip_gen: v5e
topology: v5e:2x2
jax: 0.10.0
libtpu: 0.0.40
codegen_flags: <defaults>
</compile_context>

<pallas_src>
import functools

import jax
import jax.numpy as jnp
from jax.experimental import pallas as pl
from jax.experimental.pallas import tpu as pltpu

NUM_GROUPS = 32


def _gn_kernel(x_ref, red_ref, bcast_ref, gamma_ref, beta_ref, o_ref, *, eps,
               inv_count):
    # x_ref:     (Cb, HW)  one group-block of one batch element
    # red_ref:   (Gb, Cb)  0/1 membership (reduce channels -> groups)
    # bcast_ref: (Cb, Gb)  0/1 membership transposed (broadcast groups -> chans)
    # gamma_ref, beta_ref: (Cb, 1) f32
    # Stats pass: upcast is transient (live range ends at the two row sums).
    xf = x_ref[...].astype(jnp.float32)
    row_sum = jnp.sum(xf, axis=-1, keepdims=True)      # (Cb, 1)
    row_sq = jnp.sum(xf * xf, axis=-1, keepdims=True)  # (Cb, 1)

    red = red_ref[...]
    bcast = bcast_ref[...]
    # Tiny MXU matmuls: pool per-channel sums over each group, then broadcast
    # the group statistic back to per-channel rows.  Scale applied afterwards.
    mean = jnp.dot(
        bcast, jnp.dot(red, row_sum, preferred_element_type=jnp.float32),
        preferred_element_type=jnp.float32) * inv_count            # (Cb, 1)
    ex2 = jnp.dot(
        bcast, jnp.dot(red, row_sq, preferred_element_type=jnp.float32),
        preferred_element_type=jnp.float32) * inv_count            # (Cb, 1)

    # Clamp: single-pass variance can go slightly negative via cancellation.
    var = jnp.maximum(ex2 - mean * mean, 0.0)
    inv_std = jax.lax.rsqrt(var + eps)

    # Fused normalize + affine: y = x*scale + bias.
    scale = gamma_ref[...] * inv_std                               # (Cb, 1)
    bias = beta_ref[...] - mean * scale                            # (Cb, 1)
    # Re-read x (do not keep the stats-pass f32 copy alive into this pass).
    o_ref[...] = (x_ref[...].astype(jnp.float32) * scale + bias).astype(o_ref.dtype)


def _choose_group_block(G, Cg, HW, itemsize, N):
    """Pick groups-per-block Gb: sublane-legal, ~2 MiB blocks, >=2 grid steps."""
    valid = [g for g in range(1, G + 1) if G % g == 0 and (g * Cg) % 8 == 0]
    if not valid:
        valid = [G]            # fall back to full-C block (legal for G=32 specs)
    budget = 2 << 20           # per-block bytes target (keeps default VMEM happy)
    gb = valid[0]
    for g in valid:            # valid is ascending -> ends on largest under budget
        if g * Cg * HW * itemsize <= budget:
            gb = g
    # Ensure at least 2 grid steps so both v7x TensorCores get work when N==1.
    while N * (G // gb) < 2:
        smaller = [g for g in valid if g < gb]
        if not smaller:
            break
        gb = smaller[-1]
    return gb


def group_norm(x, gamma, beta, num_groups=NUM_GROUPS, eps=1e-6):
    """x: (N, C, H, W); gamma, beta: (C,). Matches nn.GroupNorm(32, C, eps)."""
    N, C, H, W = x.shape
    assert C % num_groups == 0, "channels must be divisible by num_groups"
    G = num_groups
    Cg = C // G
    HW = H * W
    itemsize = jnp.dtype(x.dtype).itemsize

    Gb = _choose_group_block(G, Cg, HW, itemsize, N)
    GB = G // Gb               # group blocks per batch element
    Cb = Gb * Cg               # channels per block

    x2 = x.reshape(N * C, HW)

    # Factored 0/1 membership matrices (identical layout for every block since
    # each block holds Gb whole, contiguous groups).
    ch = jnp.arange(Cb, dtype=jnp.int32) // Cg
    grp = jnp.arange(Gb, dtype=jnp.int32)
    red_mat = (grp[:, None] == ch[None, :]).astype(jnp.float32)    # (Gb, Cb)
    bcast_mat = red_mat.T                                          # (Cb, Gb)

    gamma2 = gamma.reshape(C, 1).astype(jnp.float32)
    beta2 = beta.reshape(C, 1).astype(jnp.float32)

    # VMEM budget: double-buffered in+out blocks, transient f32 copy, resident
    # constants, headroom for Mosaic internal scratch.  Only raise the scoped
    # limit when actually needed; cap generation-aware (v7x has 64 MiB total).
    block_bytes = Cb * HW * itemsize
    vmem_needed = (4 * block_bytes + Cb * HW * 4 + 2 * Gb * Cb * 4
                   + 4 * C * 4 + (4 << 20))
    vmem_limit = None
    if vmem_needed > (16 << 20):
        try:
            cap = (pltpu.get_tpu_info().vmem_capacity_bytes * 3) // 4
        except Exception:
            cap = 48 << 20
        vmem_limit = int(min(vmem_needed, cap))

    kernel = functools.partial(_gn_kernel, eps=float(eps),
                               inv_count=1.0 / float(Cg * HW))

    out = pl.pallas_call(
        kernel,
        out_shape=jax.ShapeDtypeStruct((N * C, HW), x.dtype),
        grid_spec=pltpu.PrefetchScalarGridSpec(
            num_scalar_prefetch=0,
            grid=(N, GB),
            in_specs=[
                pl.BlockSpec((Cb, HW), lambda n, g: (n * GB + g, 0)),
                pl.BlockSpec((Gb, Cb), lambda n, g: (0, 0)),   # resident
                pl.BlockSpec((Cb, Gb), lambda n, g: (0, 0)),   # resident
                pl.BlockSpec((Cb, 1), lambda n, g: (g, 0)),    # gamma slice
                pl.BlockSpec((Cb, 1), lambda n, g: (g, 0)),    # beta slice
            ],
            out_specs=pl.BlockSpec((Cb, HW), lambda n, g: (n * GB + g, 0)),
        ),
        compiler_params=pltpu.CompilerParams(
            dimension_semantics=("parallel", "parallel"),
            vmem_limit_bytes=vmem_limit,
        ),
    )(x2, red_mat, bcast_mat, gamma2, beta2)

    return out.reshape(N, C, H, W)


def group_norm_ref(x, gamma, beta, num_groups=NUM_GROUPS, eps=1e-6):
    """Pure-JAX reference matching torch.nn.GroupNorm."""
    N, C, H, W = x.shape
    xg = x.reshape(N, num_groups, -1).astype(jnp.float32)
    mean = jnp.mean(xg, axis=-1, keepdims=True)
    var = jnp.mean((xg - mean) ** 2, axis=-1, keepdims=True)
    xhat = ((xg - mean) / jnp.sqrt(var + eps)).reshape(N, C, H, W)
    return (xhat * gamma[None, :, None, None]
            + beta[None, :, None, None]).astype(x.dtype)


if __name__ == "__main__":
    key = jax.random.PRNGKey(0)
    kx, kg, kb = jax.random.split(key, 3)

    N, C, H, W = 2, 64, 16, 16          # channels divisible by 32 groups
    x = jax.random.normal(kx, (N, C, H, W), dtype=jnp.float32)
    gamma = 1.0 + 0.1 * jax.random.normal(kg, (C,), dtype=jnp.float32)
    beta = 0.1 * jax.random.normal(kb, (C,), dtype=jnp.float32)

    y = group_norm(x, gamma, beta, eps=1e-6)
    jax.block_until_ready(y)

    y_ref = group_norm_ref(x, gamma, beta, eps=1e-6)
    assert jnp.allclose(y, y_ref, atol=1e-4, rtol=1e-4), "mismatch vs reference"

    print("KERNEL_OK")
</pallas_src>

<mosaic_0001>
module attributes {stable_mosaic.version = 11 : i64} {
  func.func @_gn_kernel(%arg0: i32, %arg1: i32, %arg2: memref<64x256xf32, #tpu.memory_space<vmem>>, %arg3: memref<32x64xf32, #tpu.memory_space<vmem>>, %arg4: memref<64x32xf32, #tpu.memory_space<vmem>>, %arg5: memref<64x1xf32, #tpu.memory_space<vmem>>, %arg6: memref<64x1xf32, #tpu.memory_space<vmem>>, %arg7: memref<64x256xf32, #tpu.memory_space<vmem>>) attributes {dimension_semantics = [#tpu.dimension_semantics<parallel>, #tpu.dimension_semantics<parallel>], iteration_bounds = array<i64: 2, 1>, scalar_prefetch = 0 : i64, scratch_operands = 0 : i64, tpu.core_type = #tpu.core_type<tc>, window_params = [{transform_indices = @transform_0, window_bounds = array<i64: 64, 256>}, {pipeline_mode = #tpu.pipeline_mode<synchronous>, transform_indices = @transform_1, window_bounds = array<i64: 32, 64>}, {pipeline_mode = #tpu.pipeline_mode<synchronous>, transform_indices = @transform_2, window_bounds = array<i64: 64, 32>}, {transform_indices = @transform_3, window_bounds = array<i64: 64, 1>}, {transform_indices = @transform_4, window_bounds = array<i64: 64, 1>}, {transform_indices = @transform_5, window_bounds = array<i64: 64, 256>}]} {
    %c0 = arith.constant 0 : index
    %c0_0 = arith.constant 0 : index
    %0 = vector.load %arg2[%c0, %c0_0] : memref<64x256xf32, #tpu.memory_space<vmem>>, vector<64x256xf32>
    %cst = arith.constant dense<0.000000e+00> : vector<64xf32>
    %1 = vector.multi_reduction <add>, %0, %cst [1] : vector<64x256xf32> to vector<64xf32>
    %2 = vector.shape_cast %1 : vector<64xf32> to vector<64x1xf32>
    %3 = arith.mulf %0, %0 : vector<64x256xf32>
    %cst_1 = arith.constant dense<0.000000e+00> : vector<64xf32>
    %4 = vector.multi_reduction <add>, %3, %cst_1 [1] : vector<64x256xf32> to vector<64xf32>
    %5 = vector.shape_cast %4 : vector<64xf32> to vector<64x1xf32>
    %c0_2 = arith.constant 0 : index
    %c0_3 = arith.constant 0 : index
    %6 = vector.load %arg3[%c0_2, %c0_3] : memref<32x64xf32, #tpu.memory_space<vmem>>, vector<32x64xf32>
    %c0_4 = arith.constant 0 : index
    %c0_5 = arith.constant 0 : index
    %7 = vector.load %arg4[%c0_4, %c0_5] : memref<64x32xf32, #tpu.memory_space<vmem>>, vector<64x32xf32>
    %cst_6 = arith.constant dense<0.000000e+00> : vector<32x1xf32>
    %8 = tpu.matmul %6, %2, %cst_6 {dimension_numbers = #tpu.dot_dimension_numbers<[1], [0], [0], [1], [0, 0, 1, 1], [], []>} : vector<32x64xf32>, vector<64x1xf32>, vector<32x1xf32> -> vector<32x1xf32>
    %cst_7 = arith.constant dense<0.000000e+00> : vector<64x1xf32>
    %9 = tpu.matmul %7, %8, %cst_7 {dimension_numbers = #tpu.dot_dimension_numbers<[1], [0], [0], [1], [0, 0, 1, 1], [], []>} : vector<64x32xf32>, vector<32x1xf32>, vector<64x1xf32> -> vector<64x1xf32>
    %cst_8 = arith.constant 0.001953125 : f32
    %10 = vector.broadcast %cst_8 : f32 to vector<64x1xf32>
    %11 = arith.mulf %9, %10 : vector<64x1xf32>
    %cst_9 = arith.constant dense<0.000000e+00> : vector<32x1xf32>
    %12 = tpu.matmul %6, %5, %cst_9 {dimension_numbers = #tpu.dot_dimension_numbers<[1], [0], [0], [1], [0, 0, 1, 1], [], []>} : vector<32x64xf32>, vector<64x1xf32>, vector<32x1xf32> -> vector<32x1xf32>
    %cst_10 = arith.constant dense<0.000000e+00> : vector<64x1xf32>
    %13 = tpu.matmul %7, %12, %cst_10 {dimension_numbers = #tpu.dot_dimension_numbers<[1], [0], [0], [1], [0, 0, 1, 1], [], []>} : vector<64x32xf32>, vector<32x1xf32>, vector<64x1xf32> -> vector<64x1xf32>
    %cst_11 = arith.constant 0.001953125 : f32
    %14 = vector.broadcast %cst_11 : f32 to vector<64x1xf32>
    %15 = arith.mulf %13, %14 : vector<64x1xf32>
    %16 = arith.mulf %11, %11 : vector<64x1xf32>
    %17 = arith.subf %15, %16 : vector<64x1xf32>
    %cst_12 = arith.constant 0.000000e+00 : f32
    %18 = vector.broadcast %cst_12 : f32 to vector<64x1xf32>
    %19 = arith.maximumf %17, %18 : vector<64x1xf32>
    %cst_13 = arith.constant 9.99999997E-7 : f32
    %20 = vector.broadcast %cst_13 : f32 to vector<64x1xf32>
    %21 = arith.addf %19, %20 : vector<64x1xf32>
    %22 = math.rsqrt %21 : vector<64x1xf32>
    %c0_14 = arith.constant 0 : index
    %c0_15 = arith.constant 0 : index
    %23 = vector.load %arg5[%c0_14, %c0_15] : memref<64x1xf32, #tpu.memory_space<vmem>>, vector<64x1xf32>
    %24 = arith.mulf %23, %22 : vector<64x1xf32>
    %c0_16 = arith.constant 0 : index
    %c0_17 = arith.constant 0 : index
    %25 = vector.load %arg6[%c0_16, %c0_17] : memref<64x1xf32, #tpu.memory_space<vmem>>, vector<64x1xf32>
    %26 = arith.mulf %11, %24 : vector<64x1xf32>
    %27 = arith.subf %25, %26 : vector<64x1xf32>
    %c0_18 = arith.constant 0 : index
    %c0_19 = arith.constant 0 : index
    %28 = vector.load %arg2[%c0_18, %c0_19] : memref<64x256xf32, #tpu.memory_space<vmem>>, vector<64x256xf32>
    %29 = vector.broadcast %24 : vector<64x1xf32> to vector<64x256xf32>
    %30 = arith.mulf %28, %29 : vector<64x256xf32>
    %31 = vector.broadcast %27 : vector<64x1xf32> to vector<64x256xf32>
    %32 = arith.addf %30, %31 : vector<64x256xf32>
    %c0_20 = arith.constant 0 : index
    %c0_21 = arith.constant 0 : index
    %33 = vector.load %arg7[%c0_20, %c0_21] : memref<64x256xf32, #tpu.memory_space<vmem>>, vector<64x256xf32>
    tpu.vector_store %arg7[%c0_20, %c0_21], %32 {strides = array<i32>} : memref<64x256xf32, #tpu.memory_space<vmem>>, vector<64x256xf32>,
    return
  }
  func.func @transform_0(%arg0: i32, %arg1: i32) -> (i32, i32) {
    %c1_i32 = arith.constant 1 : i32
    %0 = arith.muli %arg0, %c1_i32 : i32
    %1 = arith.addi %0, %arg1 : i32
    %c0_i32 = arith.constant 0 : i32
    %c0_i32_0 = arith.constant 0 : i32
    return %1, %c0_i32 : i32, i32
  }
  func.func @transform_1(%arg0: i32, %arg1: i32) -> (i32, i32) {
    %c0_i32 = arith.constant 0 : i32
    %c0_i32_0 = arith.constant 0 : i32
    %c0_i32_1 = arith.constant 0 : i32
    return %c0_i32, %c0_i32_0 : i32, i32
  }
  func.func @transform_2(%arg0: i32, %arg1: i32) -> (i32, i32) {
    %c0_i32 = arith.constant 0 : i32
    %c0_i32_0 = arith.constant 0 : i32
    %c0_i32_1 = arith.constant 0 : i32
    return %c0_i32, %c0_i32_0 : i32, i32
  }
  func.func @transform_3(%arg0: i32, %arg1: i32) -> (i32, i32) {
    %c0_i32 = arith.constant 0 : i32
    %c0_i32_0 = arith.constant 0 : i32
    return %arg1, %c0_i32 : i32, i32
  }
  func.func @transform_4(%arg0: i32, %arg1: i32) -> (i32, i32) {
    %c0_i32 = arith.constant 0 : i32
    %c0_i32_0 = arith.constant 0 : i32
    return %arg1, %c0_i32 : i32, i32
  }
  func.func @transform_5(%arg0: i32, %arg1: i32) -> (i32, i32) {
    %c1_i32 = arith.constant 1 : i32
    %0 = arith.muli %arg0, %c1_i32 : i32
    %1 = arith.addi %0, %arg1 : i32
    %c0_i32 = arith.constant 0 : i32
    %c0_i32_0 = arith.constant 0 : i32
    return %1, %c0_i32 : i32, i32
  }
}

</mosaic_0001>

<llo_original>
// kernel: tpu_custom_call.1
$region0: #{tpu_custom_call.1}
  #allocation0 [shape = 'u32[]', space=smem, size = 0x4, offset = 0x4, fixed_abs, tag = 'smem constant byte address 0x4 - core index']
  #allocation1 [shape = 'u32[72,128]{1,0:T(1,128)}', space=vmem, size = 0x9000, scoped, tag = 'internal scratch']
  %s0 = inlined_call_operand.hbm [shape: f32[128,256], index: 0, kind: input, shape index: {}]
  %s1 = inlined_call_operand.vmem [shape: f32[32,64], index: 1, kind: input, shape index: {}]
  %s2 = inlined_call_operand.vmem [shape: f32[64,32], index: 2, kind: input, shape index: {}]
  %s3 = inlined_call_operand.vmem [shape: f32[64,1], index: 3, kind: input, shape index: {}]
  %s4 = inlined_call_operand.vmem [shape: f32[64,1], index: 4, kind: input, shape index: {}]
  %s5 = inlined_call_operand.hbm [shape: f32[128,256], index: 5, kind: output, shape index: {}]
  %s6 = sld [smem:[#allocation0]]
  $region57: #{tpu_custom_call.1} parent=0
    _
  %s8 = ssub.s32 1, %s6
  %s9 = scalar_select 0, %s8, %s6
  $region1: #{tpu_custom_call.1} parent=0
    #allocation2 [shape = 'u8[131072]{0}', space=vmem, size = 0x20000, scoped, tag = 'input window, operand 0']
    #allocation3 [shape = 's32[2]{0}', space=sflag, size = 0x8, scoped, tag = 'scoped memory for tpu_custom_call.1']
    #allocation4 [shape = 's32[2]{0}', space=sflag, size = 0x8, scoped, tag = 'scoped memory for tpu_custom_call.1']
    #allocation5 [shape = 'u8[131072]{0}', space=vmem, size = 0x20000, scoped, tag = 'output window, operand 0']
    %10 = vsyncpa [#allocation3], 0
    %s11 = scalar_lea.sflag [#allocation3], 1
    %12 = vsyncpa %s11, 0
    %13 = vsyncpa [#allocation4], 0
    %s14 = scalar_lea.sflag [#allocation4], 1
    %15 = vsyncpa %s14, 0
    loop: start=0, step=1, limit=4
    $region2: #{tpu_custom_call.1} parent=1 // loop_pre_header
      _
    $region3: #{tpu_custom_call.1} parent=1 // loop_header
      %s17 = sphi 0, %s21
      %p18 = scmp.ge.s32.totalorder %s17, 4
      %s24 = sphi 0, %s36
      %s25 = sphi 0, %s32
      %s26 = sphi 0, %s24
      %s27 = sphi 0, %s25
      %s28 = sphi 0, %s26
      %s29 = sphi 0, %s27
      %s41 = sphi 0, %s43
      %s44 = sphi 0, %s41
      %s45 = sphi 0, %s44
      %s61 = sphi 0, %s45
      %s65 = sphi 0, %s65
      %s67 = sphi 0, %s65
      %s68 = sphi 0, %s67
      %s82 = sphi 0, %s68
      %s86 = sphi 0, %s86
      %s88 = sphi 0, %s86
      %s89 = sphi 0, %s88
      %s103 = sphi 0, %s89
      %s109 = sphi 0, %s111
      %s112 = sphi 0, %s109
      %s113 = sphi 0, %s112
      %s129 = sphi 0, %s113
      %s135 = sphi 0, %s137
      %s138 = sphi 0, %s135
      %s139 = sphi 0, %s138
      %s155 = sphi 0, %s139
      %s163 = sphi 0, %s165
      %s166 = sphi 0, %s163
      %s167 = sphi 0, %s166
      %s183 = sphi 0, %s167
    $region4: #{tpu_custom_call.1} parent=1 // loop_header_branch
      %20 = sbr.rel (%p18) target = $region8
    $region5: #{tpu_custom_call.1} parent=1 // loop_body
      %s22 = ssub.s32 %s17, 1
      %s23 = ssub.s32 %s17, 2
      %s30 = sadd.s32 1, %s25
      %p31 = scmp.ge.s32.totalorder %s30, 1
      %s32 = scalar_select %p31, 0, %s30
      %s33 = sadd.s32 1, %s24
      %s34 = scalar_select %p31, %s33, %s24
      %p35 = scmp.ge.s32.totalorder %s34, 2
      %s36 = scalar_select %p35, 0, %s34
      %s37 = sadd.s32 %s24, %s25
      %s38 = sadd.s32 %s36, %s32
      %s39 = ssub.s32 %s37, %s38
      %p40 = scmp.eq.s32.totalorder %s39, 0
      %s42 = sadd.s32 %s41, 1
      %s43 = scalar_select %p40, %s41, %s42
      %p46 = pneg %p40
      %p47 = scmp.eq.s32.totalorder %s17, 1
      %p48 = por %p46, %p47
      %p49 = scmp.ne.s32.totalorder %s41, %s44
      %p50 = scmp.eq.s32.totalorder %s17, 0
      %p51 = por %p49, %p50
      %p52 = scmp.ne.s32.totalorder %s41, %s44
      %p53 = scmp.eq.s32.totalorder %s22, 1
      %p54 = por %p52, %p53
      %p55 = scmp.ne.s32.totalorder %s44, %s45
      %p56 = scmp.eq.s32.totalorder %s22, 0
      %p57 = por %p55, %p56
      %p58 = scmp.ne.s32.totalorder %s44, %s45
      %p59 = scmp.eq.s32.totalorder %s23, 1
      %p60 = por %p58, %p59
      %p62 = scmp.ne.s32.totalorder %s45, %s61
      %p63 = scmp.eq.s32.totalorder %s23, 0
      %p64 = por %p62, %p63
      %s66 = sadd.s32 %s65, 1
      %p69 = scmp.eq.s32.totalorder %s17, 1
      %p70 = scmp.ne.s32.totalorder %s65, %s67
      %p71 = scmp.eq.s32.totalorder %s17, 0
      %p72 = por %p70, %p71
      %p73 = scmp.ne.s32.totalorder %s65, %s67
      %p74 = scmp.eq.s32.totalorder %s22, 1
      %p75 = por %p73, %p74
      %p76 = scmp.ne.s32.totalorder %s67, %s68
      %p77 = scmp.eq.s32.totalorder %s22, 0
      %p78 = por %p76, %p77
      %p79 = scmp.ne.s32.totalorder %s67, %s68
      %p80 = scmp.eq.s32.totalorder %s23, 1
      %p81 = por %p79, %p80
      %p83 = scmp.ne.s32.totalorder %s68, %s82
      %p84 = scmp.eq.s32.totalorder %s23, 0
      %p85 = por %p83, %p84
      %s87 = sadd.s32 %s86, 1
      %p90 = scmp.eq.s32.totalorder %s17, 1
      %p91 = scmp.ne.s32.totalorder %s86, %s88
      %p92 = scmp.eq.s32.totalorder %s17, 0
      %p93 = por %p91, %p92
      %p94 = scmp.ne.s32.totalorder %s86, %s88
      %p95 = scmp.eq.s32.totalorder %s22, 1
      %p96 = por %p94, %p95
      %p97 = scmp.ne.s32.totalorder %s88, %s89
      %p98 = scmp.eq.s32.totalorder %s22, 0
      %p99 = por %p97, %p98
      %p100 = scmp.ne.s32.totalorder %s88, %s89
      %p101 = scmp.eq.s32.totalorder %s23, 1
      %p102 = por %p100, %p101
      %p104 = scmp.ne.s32.totalorder %s89, %s103
      %p105 = scmp.eq.s32.totalorder %s23, 0
      %p106 = por %p104, %p105
      %s107 = ssub.s32 %s25, %s32
      %p108 = scmp.eq.s32.totalorder %s107, 0
      %s110 = sadd.s32 %s109, 1
      %s111 = scalar_select %p108, %s109, %s110
      %p114 = pneg %p108
      %p115 = scmp.eq.s32.totalorder %s17, 1
      %p116 = por %p114, %p115
      %p117 = scmp.ne.s32.totalorder %s109, %s112
      %p118 = scmp.eq.s32.totalorder %s17, 0
      %p119 = por %p117, %p118
      %p120 = scmp.ne.s32.totalorder %s109, %s112
      %p121 = scmp.eq.s32.totalorder %s22, 1
      %p122 = por %p120, %p121
      %p123 = scmp.ne.s32.totalorder %s112, %s113
      %p124 = scmp.eq.s32.totalorder %s22, 0
      %p125 = por %p123, %p124
      %p126 = scmp.ne.s32.totalorder %s112, %s113
      %p127 = scmp.eq.s32.totalorder %s23, 1
      %p128 = por %p126, %p127
      %p130 = scmp.ne.s32.totalorder %s113, %s129
      %p131 = scmp.eq.s32.totalorder %s23, 0
      %p132 = por %p130, %p131
      %s133 = ssub.s32 %s25, %s32
      %p134 = scmp.eq.s32.totalorder %s133, 0
      %s136 = sadd.s32 %s135, 1
      %s137 = scalar_select %p134, %s135, %s136
      %p140 = pneg %p134
      %p141 = scmp.eq.s32.totalorder %s17, 1
      %p142 = por %p140, %p141
      %p143 = scmp.ne.s32.totalorder %s135, %s138
      %p144 = scmp.eq.s32.totalorder %s17, 0
      %p145 = por %p143, %p144
      %p146 = scmp.ne.s32.totalorder %s135, %s138
      %p147 = scmp.eq.s32.totalorder %s22, 1
      %p148 = por %p146, %p147
      %p149 = scmp.ne.s32.totalorder %s138, %s139
      %p150 = scmp.eq.s32.totalorder %s22, 0
      %p151 = por %p149, %p150
      %p152 = scmp.ne.s32.totalorder %s138, %s139
      %p153 = scmp.eq.s32.totalorder %s23, 1
      %p154 = por %p152, %p153
      %p156 = scmp.ne.s32.totalorder %s139, %s155
      %p157 = scmp.eq.s32.totalorder %s23, 0
      %p158 = por %p156, %p157
      %s159 = sadd.s32 %s24, %s25
      %s160 = sadd.s32 %s36, %s32
      %s161 = ssub.s32 %s159, %s160
      %p162 = scmp.eq.s32.totalorder %s161, 0
      %s164 = sadd.s32 %s163, 1
      %s165 = scalar_select %p162, %s163, %s164
      %p168 = pneg %p162
      %p169 = scmp.eq.s32.totalorder %s17, 1
      %p170 = por %p168, %p169
      %p171 = scmp.ne.s32.totalorder %s163, %s166
      %p172 = scmp.eq.s32.totalorder %s17, 0
      %p173 = por %p171, %p172
      %p174 = scmp.ne.s32.totalorder %s163, %s166
      %p175 = scmp.eq.s32.totalorder %s22, 1
      %p176 = por %p174, %p175
      %p177 = scmp.ne.s32.totalorder %s166, %s167
      %p178 = scmp.eq.s32.totalorder %s22, 0
      %p179 = por %p177, %p178
      %p180 = scmp.ne.s32.totalorder %s166, %s167
      %p181 = scmp.eq.s32.totalorder %s23, 1
      %p182 = por %p180, %p181
      %p184 = scmp.ne.s32.totalorder %s167, %s183
      %p185 = scmp.eq.s32.totalorder %s23, 0
      %p186 = por %p184, %p185
      %p187 = scmp.le.s32.totalorder 1, %s17
      %p188 = scmp.lt.s32.totalorder %s17, 3
      %p189 = pnand %p187, %p188
      %p190 = pneg %p189
      // Predicated region
      $region9: #{tpu_custom_call.1} parent=5 // pred_check
        _
      $region10: #{tpu_custom_call.1} parent=5 // pred_check_branch
        %192 = sbr.rel (%p189) target = $region12
      $region11: #{tpu_custom_call.1} parent=5 // pred_region
        %s193 = ssub.s32 %s17, 1
        // Predicated region
        $region13: #{tpu_custom_call.1} parent=11 // pred_check
          %p194 = pneg %p78
        $region14: #{tpu_custom_call.1} parent=11 // pred_check_branch
          %196 = sbr.rel (%p194) target = $region16
        $region15: #{tpu_custom_call.1} parent=11 // pred_region
          _
        $region16: #{tpu_custom_call.1} parent=11 // pred_fallthru
          _
        // Predicated region
        $region17: #{tpu_custom_call.1} parent=11 // pred_check
          %p197 = pneg %p99
        $region18: #{tpu_custom_call.1} parent=11 // pred_check_branch
          %199 = sbr.rel (%p197) target = $region20
        $region19: #{tpu_custom_call.1} parent=11 // pred_region
          _
        $region20: #{tpu_custom_call.1} parent=11 // pred_fallthru
          _
        // Predicated region
        $region21: #{tpu_custom_call.1} parent=11 // pred_check
          %p200 = pneg %p125
        $region22: #{tpu_custom_call.1} parent=11 // pred_check_branch
          %202 = sbr.rel (%p200) target = $region24
        $region23: #{tpu_custom_call.1} parent=11 // pred_region
          %s203 = smul.u32 8, %s27
          %p204 = scmp.lt.s32.totalorder %s203, 7
          %s205 = scalar_select %p204, %s203, 7
          %s206 = smul.addr %s205, 8
          %s207 = scalar_lea.vmem %s3, %s206
          %s208 = smul.u32 8, %s27
        $region24: #{tpu_custom_call.1} parent=11 // pred_fallthru
          _
        // Predicated region
        $region25: #{tpu_custom_call.1} parent=11 // pred_check
          %p209 = pneg %p151
        $region26: #{tpu_custom_call.1} parent=11 // pred_check_branch
          %211 = sbr.rel (%p209) target = $region28
        $region27: #{tpu_custom_call.1} parent=11 // pred_region
          %s212 = smul.u32 8, %s27
          %p213 = scmp.lt.s32.totalorder %s212, 7
          %s214 = scalar_select %p213, %s212, 7
          %s215 = smul.addr %s214, 8
          %s216 = scalar_lea.vmem %s4, %s215
          %s217 = smul.u32 8, %s27
        $region28: #{tpu_custom_call.1} parent=11 // pred_fallthru
          _
      $region12: #{tpu_custom_call.1} parent=5 // pred_fallthru
        _
      %p218 = scmp.lt.s32.totalorder %s17, 2
      // Predicated region
      $region29: #{tpu_custom_call.1} parent=5 // pred_check
        %p219 = pneg %p218
      $region30: #{tpu_custom_call.1} parent=5 // pred_check_branch
        %221 = sbr.rel (%p219) target = $region32
      $region31: #{tpu_custom_call.1} parent=5 // pred_region
        // Predicated region
        $region33: #{tpu_custom_call.1} parent=31 // pred_check
          %p222 = pneg %p51
        $region34: #{tpu_custom_call.1} parent=31 // pred_check_branch
          %224 = sbr.rel (%p222) target = $region36
        $region35: #{tpu_custom_call.1} parent=31 // pred_region
          %s225 = sand.u32 %s41, 1
          %s226 = scalar_lea.sflag [#allocation3], %s225
          %s227 = sand.u32 %s41, 1
          %s228 = smul.addr %s227, 128
          %s229 = scalar_lea.vmem [#allocation2], %s228
          %s230 = sadd.s32 %s24, %s25
          %s231 = smul.u32 8, %s230
          %233 = vsyncadd %s226, 0
          %s234 = smul.addr %s231, 2
          %s235 = smul.addr %s234, 8
          %s236 = scalar_lea.hbm %s0, %s235
          %s237 = sshll.u32 %s236, 4
          %s238 = int_to_ptr.hbm [resolvable:$true] %s237
          %s239 = sshll.u32 %s229, 4
          %s240 = int_to_ptr.vmem [resolvable:$true] %s239
          %245 = dma.hbm_to_vmem [thread:$0]  %s238, 2048, %s240, %s226, 256, 256, 16
        $region36: #{tpu_custom_call.1} parent=31 // pred_fallthru
          _
      $region32: #{tpu_custom_call.1} parent=5 // pred_fallthru
        _
      %p246 = scmp.le.s32.totalorder 1, %s17
      %p247 = scmp.lt.s32.totalorder %s17, 3
      %p248 = pnand %p246, %p247
      %p249 = pneg %p248
      // Predicated region
      $region37: #{tpu_custom_call.1} parent=5 // pred_check
        _
      $region38: #{tpu_custom_call.1} parent=5 // pred_check_branch
        %251 = sbr.rel (%p248) target = $region40
      $region39: #{tpu_custom_call.1} parent=5 // pred_region
        %s252 = ssub.s32 %s17, 1
        %s253 = sand.u32 %s44, 1
        %s254 = scalar_lea.sflag [#allocation3], %s253
        %s255 = sand.u32 %s44, 1
        %s256 = smul.addr %s255, 128
        %s257 = scalar_lea.vmem [#allocation2], %s256
        // Predicated region
        $region41: #{tpu_custom_call.1} parent=39 // pred_check
          %p258 = pneg %p57
        $region42: #{tpu_custom_call.1} parent=39 // pred_check_branch
          %260 = sbr.rel (%p258) target = $region44
        $region43: #{tpu_custom_call.1} parent=39 // pred_region
          %262 = dma.done %s254, 2048
        $region44: #{tpu_custom_call.1} parent=39 // pred_fallthru
          _
        %s263 = sand.u32 %s44, 1
        %s264 = scalar_lea.sflag [#allocation3], %s263
        %s265 = sand.u32 %s44, 1
        %s266 = smul.addr %s265, 128
        %s267 = scalar_lea.vmem [#allocation2], %s266
        %p268 = pneg %p57
        %p269 = pneg %p54
        %p270 = pneg %p78
        %p271 = pneg %p75
        %p272 = pneg %p99
        %p273 = pneg %p96
        %s274 = smul.u32 8, %s27
        %p275 = scmp.lt.s32.totalorder %s274, 7
        %s276 = scalar_select %p275, %s274, 7
        %s277 = smul.addr %s276, 8
        %s278 = scalar_lea.vmem %s3, %s277
        %p279 = pneg %p125
        %p280 = pneg %p122
        %s281 = smul.u32 8, %s27
        %p282 = scmp.lt.s32.totalorder %s281, 7
        %s283 = scalar_select %p282, %s281, 7
        %s284 = smul.addr %s283, 8
        %s285 = scalar_lea.vmem %s4, %s284
        %p286 = pneg %p151
        %p287 = pneg %p148
        %p288 = pneg %p179
        %p289 = pneg %p176
        %s290 = sand.u32 %s166, 1
        %s291 = scalar_lea.sflag [#allocation4], %s290
        %s292 = sand.u32 %s166, 1
        %s293 = smul.addr %s292, 128
        %s294 = scalar_lea.vmem [#allocation5], %s293
        %s295 = sadd.s32 %s26, %s27
        %s296 = smul.u32 8, %s295
        %s297 = smul.u32 8, %s27
        %p298 = scmp.lt.s32.totalorder %s297, 7
        %s299 = scalar_select %p298, %s297, 7
        %s300 = smul.addr %s299, 8
        %s301 = scalar_lea.vmem %s3, %s300
        %s302 = smul.u32 8, %s27
        %s303 = smul.u32 8, %s27
        %p304 = scmp.lt.s32.totalorder %s303, 7
        %s305 = scalar_select %p304, %s303, 7
        %s306 = smul.addr %s305, 8
        %s307 = scalar_lea.vmem %s4, %s306
        %s308 = smul.u32 8, %s27
        %s309 = sadd.s32 %s26, %s27
        %s310 = smul.u32 8, %s309
        %v311 = vld [vmem:[%s257] sm:$0xff]
        %v312 = vld [vmem:[%s257 + $0x8] sm:$0xff]
        %v313 = vld [vmem:[%s257 + $0x10] sm:$0xff]
        %v314 = vld [vmem:[%s257 + $0x18] sm:$0xff]
        %v315 = vld [vmem:[%s257 + $0x20] sm:$0xff]
        %v316 = vld [vmem:[%s257 + $0x28] sm:$0xff]
        %v317 = vld [vmem:[%s257 + $0x30] sm:$0xff]
        %v318 = vld [vmem:[%s257 + $0x38] sm:$0xff]
        %v319 = vld [vmem:[%s257 + $0x40] sm:$0xff]
        %v320 = vld [vmem:[%s257 + $0x48] sm:$0xff]
        %v321 = vld [vmem:[%s257 + $0x50] sm:$0xff]
        %v322 = vld [vmem:[%s257 + $0x58] sm:$0xff]
        %v323 = vld [vmem:[%s257 + $0x60] sm:$0xff]
        %v324 = vld [vmem:[%s257 + $0x68] sm:$0xff]
        %v325 = vld [vmem:[%s257 + $0x70] sm:$0xff]
        %v326 = vld [vmem:[%s257 + $0x78] sm:$0xff]
        %v327 = vadd.f32 %v311, %v312
        %328 = vadd.xlane.f32.xlu0 %v327
        %v329 = vpop.xlane.xlu0 %328
        %v330 = vadd.f32 %v313, %v314
        %331 = vadd.xlane.f32.xlu0 %v330
        %v332 = vpop.xlane.xlu0 %331
        %v333 = vadd.f32 %v315, %v316
        %334 = vadd.xlane.f32.xlu0 %v333
        %v335 = vpop.xlane.xlu0 %334
        %v336 = vadd.f32 %v317, %v318
        %337 = vadd.xlane.f32.xlu0 %v336
        %v338 = vpop.xlane.xlu0 %337
        %v339 = vadd.f32 %v319, %v320
        %340 = vadd.xlane.f32.xlu0 %v339
        %v341 = vpop.xlane.xlu0 %340
        %v342 = vadd.f32 %v321, %v322
        %343 = vadd.xlane.f32.xlu0 %v342
        %v344 = vpop.xlane.xlu0 %343
        %v345 = vadd.f32 %v323, %v324
        %346 = vadd.xlane.f32.xlu0 %v345
        %v347 = vpop.xlane.xlu0 %346
        %v348 = vadd.f32 %v325, %v326
        %349 = vadd.xlane.f32.xlu0 %v348
        %v350 = vpop.xlane.xlu0 %349
        %v351 = vmul.f32 %v311, %v311
        %v352 = vmul.f32 %v312, %v312
        %v353 = vmul.f32 %v313, %v313
        %v354 = vmul.f32 %v314, %v314
        %v355 = vmul.f32 %v315, %v315
        %v356 = vmul.f32 %v316, %v316
        %v357 = vmul.f32 %v317, %v317
        %v358 = vmul.f32 %v318, %v318
        %v359 = vmul.f32 %v319, %v319
        %v360 = vmul.f32 %v320, %v320
        %v361 = vmul.f32 %v321, %v321
        %v362 = vmul.f32 %v322, %v322
        %v363 = vmul.f32 %v323, %v323
        %v364 = vmul.f32 %v324, %v324
        %v365 = vmul.f32 %v325, %v325
        %v366 = vmul.f32 %v326, %v326
        %v367 = vadd.f32 %v351, %v352
        %368 = vadd.xlane.f32.xlu0 %v367
        %v369 = vpop.xlane.xlu0 %368
        %v370 = vadd.f32 %v353, %v354
        %371 = vadd.xlane.f32.xlu0 %v370
        %v372 = vpop.xlane.xlu0 %371
        %v373 = vadd.f32 %v355, %v356
        %374 = vadd.xlane.f32.xlu0 %v373
        %v375 = vpop.xlane.xlu0 %374
        %v376 = vadd.f32 %v357, %v358
        %377 = vadd.xlane.f32.xlu0 %v376
        %v378 = vpop.xlane.xlu0 %377
        %v379 = vadd.f32 %v359, %v360
        %380 = vadd.xlane.f32.xlu0 %v379
        %v381 = vpop.xlane.xlu0 %380
        %v382 = vadd.f32 %v361, %v362
        %383 = vadd.xlane.f32.xlu0 %v382
        %v384 = vpop.xlane.xlu0 %383
        %v385 = vadd.f32 %v363, %v364
        %386 = vadd.xlane.f32.xlu0 %v385
        %v387 = vpop.xlane.xlu0 %386
        %v388 = vadd.f32 %v365, %v366
        %389 = vadd.xlane.f32.xlu0 %v388
        %v390 = vpop.xlane.xlu0 %389
        %v391 = vld [vmem:[%s1] sm:$0xff]
        %v392 = vld [vmem:[%s1 + $0x8] sm:$0xff]
        %v393 = vld [vmem:[%s1 + $0x10] sm:$0xff]
        %v394 = vld [vmem:[%s1 + $0x18] sm:$0xff]
        %v395 = vld [vmem:[%s2] sm:$0xff]
        %v396 = vld [vmem:[%s2 + $0x8] sm:$0xff]
        %v397 = vld [vmem:[%s2 + $0x10] sm:$0xff]
        %v398 = vld [vmem:[%s2 + $0x18] sm:$0xff]
        %v399 = vld [vmem:[%s2 + $0x20] sm:$0xff]
        %v400 = vld [vmem:[%s2 + $0x28] sm:$0xff]
        %v401 = vld [vmem:[%s2 + $0x30] sm:$0xff]
        %v402 = vld [vmem:[%s2 + $0x38] sm:$0xff]
        %vm403 = vcmask 523264
        %v405 = vsel %vm403, %v391, 0
        %v408 = vsel %vm403, %v392, 0
        %v411 = vsel %vm403, %v393, 0
        %v414 = vsel %vm403, %v394, 0
        %416 = vmatpush.msra.mxu0 0.0
        %417 = vmatpush.msra.mxu0 0.0
        %418 = vmatpush.msra.mxu0 0.0
        %419 = vmatpush.msra.mxu0 0.0
        %420 = vmatpush.msra.mxu0 0.0
        %421 = vmatpush.msra.mxu0 0.0
        %422 = vmatpush.msra.mxu0 0.0
        %423 = vmatpush.msra.mxu0 0.0
        %424 = vmatpush.msra.mxu0 %v350
        %425 = vmatpush.msra.mxu0 %v347
        %426 = vmatpush.msra.mxu0 %v344
        %427 = vmatpush.msra.mxu0 %v341
        %428 = vmatpush.msra.mxu0 %v338
        %429 = vmatpush.msra.mxu0 %v335
        %430 = vmatpush.msra.mxu0 %v332
        %431 = vmatpush.msra.mxu0 %v329
        %432 = vmatmul.f32.gmra.mxu0 %v405
        %v433 = vpop.f32.mrf.mxu0
        %v434 = vadd.f32 0.0, %v433
        %435 = vmatmul.f32.gmra.mxu0 %v408
        %v436 = vpop.f32.mrf.mxu0
        %v437 = vadd.f32 0.0, %v436
        %438 = vmatmul.f32.gmra.mxu0 %v411
        %v439 = vpop.f32.mrf.mxu0
        %v440 = vadd.f32 0.0, %v439
        %441 = vmatmul.f32.gmra.mxu0 %v414
        %v442 = vpop.f32.mrf.mxu0
        %v443 = vadd.f32 0.0, %v442
        %444 = vdwg.mxu0
        %vm445 = vcmask 261120
        %v447 = vsel %vm445, %v395, 0
        %v450 = vsel %vm445, %v396, 0
        %v453 = vsel %vm445, %v397, 0
        %v456 = vsel %vm445, %v398, 0
        %v459 = vsel %vm445, %v399, 0
        %v462 = vsel %vm445, %v400, 0
        %v465 = vsel %vm445, %v401, 0
        %v468 = vsel %vm445, %v402, 0
        %470 = vmatpush.msra.mxu0 0.0
        %471 = vmatpush.msra.mxu0 0.0
        %472 = vmatpush.msra.mxu0 0.0
        %473 = vmatpush.msra.mxu0 0.0
        %474 = vmatpush.msra.mxu0 0.0
        %475 = vmatpush.msra.mxu0 0.0
        %476 = vmatpush.msra.mxu0 0.0
        %477 = vmatpush.msra.mxu0 0.0
        %478 = vmatpush.msra.mxu0 0.0
        %479 = vmatpush.msra.mxu0 0.0
        %480 = vmatpush.msra.mxu0 0.0
        %481 = vmatpush.msra.mxu0 0.0
        %482 = vmatpush.msra.mxu0 %v443
        %483 = vmatpush.msra.mxu0 %v440
        %484 = vmatpush.msra.mxu0 %v437
        %485 = vmatpush.msra.mxu0 %v434
        %486 = vmatmul.f32.gmra.mxu0 %v447
        %v487 = vpop.f32.mrf.mxu0
        %v488 = vadd.f32 0.0, %v487
        %489 = vmatmul.f32.gmra.mxu0 %v450
        %v490 = vpop.f32.mrf.mxu0
        %v491 = vadd.f32 0.0, %v490
        %492 = vmatmul.f32.gmra.mxu0 %v453
        %v493 = vpop.f32.mrf.mxu0
        %v494 = vadd.f32 0.0, %v493
        %495 = vmatmul.f32.gmra.mxu0 %v456
        %v496 = vpop.f32.mrf.mxu0
        %v497 = vadd.f32 0.0, %v496
        %498 = vmatmul.f32.gmra.mxu0 %v459
        %v499 = vpop.f32.mrf.mxu0
        %v500 = vadd.f32 0.0, %v499
        %501 = vmatmul.f32.gmra.mxu0 %v462
        %v502 = vpop.f32.mrf.mxu0
        %v503 = vadd.f32 0.0, %v502
        %504 = vmatmul.f32.gmra.mxu0 %v465
        %v505 = vpop.f32.mrf.mxu0
        %v506 = vadd.f32 0.0, %v505
        %507 = vmatmul.f32.gmra.mxu0 %v468
        %v508 = vpop.f32.mrf.mxu0
        %v509 = vadd.f32 0.0, %v508
        %510 = vdwg.mxu0
        %v511 = vmul.f32 %v488, 0.001953125
        %v512 = vmul.f32 %v491, 0.001953125
        %v513 = vmul.f32 %v494, 0.001953125
        %v514 = vmul.f32 %v497, 0.001953125
        %v515 = vmul.f32 %v500, 0.001953125
        %v516 = vmul.f32 %v503, 0.001953125
        %v517 = vmul.f32 %v506, 0.001953125
        %v518 = vmul.f32 %v509, 0.001953125
        %519 = vmatpush.msra.mxu0 0.0
        %520 = vmatpush.msra.mxu0 0.0
        %521 = vmatpush.msra.mxu0 0.0
        %522 = vmatpush.msra.mxu0 0.0
        %523 = vmatpush.msra.mxu0 0.0
        %524 = vmatpush.msra.mxu0 0.0
        %525 = vmatpush.msra.mxu0 0.0
        %526 = vmatpush.msra.mxu0 0.0
        %527 = vmatpush.msra.mxu0 %v390
        %528 = vmatpush.msra.mxu0 %v387
        %529 = vmatpush.msra.mxu0 %v384
        %530 = vmatpush.msra.mxu0 %v381
        %531 = vmatpush.msra.mxu0 %v378
        %532 = vmatpush.msra.mxu0 %v375
        %533 = vmatpush.msra.mxu0 %v372
        %534 = vmatpush.msra.mxu0 %v369
        %535 = vmatmul.f32.gmra.mxu0 %v405
        %v536 = vpop.f32.mrf.mxu0
        %v537 = vadd.f32 0.0, %v536
        %538 = vmatmul.f32.gmra.mxu0 %v408
        %v539 = vpop.f32.mrf.mxu0
        %v540 = vadd.f32 0.0, %v539
        %541 = vmatmul.f32.gmra.mxu0 %v411
        %v542 = vpop.f32.mrf.mxu0
        %v543 = vadd.f32 0.0, %v542
        %544 = vmatmul.f32.gmra.mxu0 %v414
        %v545 = vpop.f32.mrf.mxu0
        %v546 = vadd.f32 0.0, %v545
        %547 = vdwg.mxu0
        %548 = vmatpush.msra.mxu0 0.0
        %549 = vmatpush.msra.mxu0 0.0
        %550 = vmatpush.msra.mxu0 0.0
        %551 = vmatpush.msra.mxu0 0.0
        %552 = vmatpush.msra.mxu0 0.0
        %553 = vmatpush.msra.mxu0 0.0
        %554 = vmatpush.msra.mxu0 0.0
        %555 = vmatpush.msra.mxu0 0.0
        %556 = vmatpush.msra.mxu0 0.0
        %557 = vmatpush.msra.mxu0 0.0
        %558 = vmatpush.msra.mxu0 0.0
        %559 = vmatpush.msra.mxu0 0.0
        %560 = vmatpush.msra.mxu0 %v546
        %561 = vmatpush.msra.mxu0 %v543
        %562 = vmatpush.msra.mxu0 %v540
        %563 = vmatpush.msra.mxu0 %v537
        %564 = vmatmul.f32.gmra.mxu0 %v447
        %v565 = vpop.f32.mrf.mxu0
        %v566 = vadd.f32 0.0, %v565
        %567 = vmatmul.f32.gmra.mxu0 %v450
        %v568 = vpop.f32.mrf.mxu0
        %v569 = vadd.f32 0.0, %v568
        %570 = vmatmul.f32.gmra.mxu0 %v453
        %v571 = vpop.f32.mrf.mxu0
        %v572 = vadd.f32 0.0, %v571
        %573 = vmatmul.f32.gmra.mxu0 %v456
        %v574 = vpop.f32.mrf.mxu0
        %v575 = vadd.f32 0.0, %v574
        %576 = vmatmul.f32.gmra.mxu0 %v459
        %v577 = vpop.f32.mrf.mxu0
        %v578 = vadd.f32 0.0, %v577
        %579 = vmatmul.f32.gmra.mxu0 %v462
        %v580 = vpop.f32.mrf.mxu0
        %v581 = vadd.f32 0.0, %v580
        %582 = vmatmul.f32.gmra.mxu0 %v465
        %v583 = vpop.f32.mrf.mxu0
        %v584 = vadd.f32 0.0, %v583
        %585 = vmatmul.f32.gmra.mxu0 %v468
        %v586 = vpop.f32.mrf.mxu0
        %v587 = vadd.f32 0.0, %v586
        %588 = vdwg.mxu0
        %v589 = vmul.f32 %v566, 0.001953125
        %v590 = vmul.f32 %v569, 0.001953125
        %v591 = vmul.f32 %v572, 0.001953125
        %v592 = vmul.f32 %v575, 0.001953125
        %v593 = vmul.f32 %v578, 0.001953125
        %v594 = vmul.f32 %v581, 0.001953125
        %v595 = vmul.f32 %v584, 0.001953125
        %v596 = vmul.f32 %v587, 0.001953125
        %v597 = vmul.f32 %v511, %v511
        %v598 = vmul.f32 %v512, %v512
        %v599 = vmul.f32 %v513, %v513
        %v600 = vmul.f32 %v514, %v514
        %v601 = vmul.f32 %v515, %v515
        %v602 = vmul.f32 %v516, %v516
        %v603 = vmul.f32 %v517, %v517
        %v604 = vmul.f32 %v518, %v518
        %v605 = vsub.f32 %v589, %v597
        %v606 = vsub.f32 %v590, %v598
        %v607 = vsub.f32 %v591, %v599
        %v608 = vsub.f32 %v592, %v600
        %v609 = vsub.f32 %v593, %v601
        %v610 = vsub.f32 %v594, %v602
        %v611 = vsub.f32 %v595, %v603
        %v612 = vsub.f32 %v596, %v604
        %v613 = vmax.f32 %v605, 0.0
        %v614 = vmax.f32 %v606, 0.0
        %v615 = vmax.f32 %v607, 0.0
        %v616 = vmax.f32 %v608, 0.0
        %v617 = vmax.f32 %v609, 0.0
        %v618 = vmax.f32 %v610, 0.0
        %v619 = vmax.f32 %v611, 0.0
        %v620 = vmax.f32 %v612, 0.0
        %v621 = vadd.f32 %v613, 1e-06
        %v622 = vadd.f32 %v614, 1e-06
        %v623 = vadd.f32 %v615, 1e-06
        %v624 = vadd.f32 %v616, 1e-06
        %v625 = vadd.f32 %v617, 1e-06
        %v626 = vadd.f32 %v618, 1e-06
        %v627 = vadd.f32 %v619, 1e-06
        %v628 = vadd.f32 %v620, 1e-06
        %v629 = vrsqrt.pop %v621
        %v630 = vmul.f32 %v629, %v621
        %v631 = vmul.f32 %v630, %v629
        %v632 = vmul.f32 0.5, %v631
        %v633 = vsub.f32 1.5, %v632
        %v634 = vmul.f32 %v629, %v633
        %vm635 = vweird.f32 %v621
        %vm636 = vweird.f32 %v629
        %vm637 = vmor %vm635, %vm636
        %v638 = vsel %vm637, %v629, %v634
        %v639 = vrsqrt.pop %v622
        %v640 = vmul.f32 %v639, %v622
        %v641 = vmul.f32 %v640, %v639
        %v642 = vmul.f32 0.5, %v641
        %v643 = vsub.f32 1.5, %v642
        %v644 = vmul.f32 %v639, %v643
        %vm645 = vweird.f32 %v622
        %vm646 = vweird.f32 %v639
        %vm647 = vmor %vm645, %vm646
        %v648 = vsel %vm647, %v639, %v644
        %v649 = vrsqrt.pop %v623
        %v650 = vmul.f32 %v649, %v623
        %v651 = vmul.f32 %v650, %v649
        %v652 = vmul.f32 0.5, %v651
        %v653 = vsub.f32 1.5, %v652
        %v654 = vmul.f32 %v649, %v653
        %vm655 = vweird.f32 %v623
        %vm656 = vweird.f32 %v649
        %vm657 = vmor %vm655, %vm656
        %v658 = vsel %vm657, %v649, %v654
        %v659 = vrsqrt.pop %v624
        %v660 = vmul.f32 %v659, %v624
        %v661 = vmul.f32 %v660, %v659
        %v662 = vmul.f32 0.5, %v661
        %v663 = vsub.f32 1.5, %v662
        %v664 = vmul.f32 %v659, %v663
        %vm665 = vweird.f32 %v624
        %vm666 = vweird.f32 %v659
        %vm667 = vmor %vm665, %vm666
        %v668 = vsel %vm667, %v659, %v664
        %v669 = vrsqrt.pop %v625
        %v670 = vmul.f32 %v669, %v625
        %v671 = vmul.f32 %v670, %v669
        %v672 = vmul.f32 0.5, %v671
        %v673 = vsub.f32 1.5, %v672
        %v674 = vmul.f32 %v669, %v673
        %vm675 = vweird.f32 %v625
        %vm676 = vweird.f32 %v669
        %vm677 = vmor %vm675, %vm676
        %v678 = vsel %vm677, %v669, %v674
        %v679 = vrsqrt.pop %v626
        %v680 = vmul.f32 %v679, %v626
        %v681 = vmul.f32 %v680, %v679
        %v682 = vmul.f32 0.5, %v681
        %v683 = vsub.f32 1.5, %v682
        %v684 = vmul.f32 %v679, %v683
        %vm685 = vweird.f32 %v626
        %vm686 = vweird.f32 %v679
        %vm687 = vmor %vm685, %vm686
        %v688 = vsel %vm687, %v679, %v684
        %v689 = vrsqrt.pop %v627
        %v690 = vmul.f32 %v689, %v627
        %v691 = vmul.f32 %v690, %v689
        %v692 = vmul.f32 0.5, %v691
        %v693 = vsub.f32 1.5, %v692
        %v694 = vmul.f32 %v689, %v693
        %vm695 = vweird.f32 %v627
        %vm696 = vweird.f32 %v689
        %vm697 = vmor %vm695, %vm696
        %v698 = vsel %vm697, %v689, %v694
        %v699 = vrsqrt.pop %v628
        %v700 = vmul.f32 %v699, %v628
        %v701 = vmul.f32 %v700, %v699
        %v702 = vmul.f32 0.5, %v701
        %v703 = vsub.f32 1.5, %v702
        %v704 = vmul.f32 %v699, %v703
        %vm705 = vweird.f32 %v628
        %vm706 = vweird.f32 %v699
        %vm707 = vmor %vm705, %vm706
        %v708 = vsel %vm707, %v699, %v704
        %v709 = vld [vmem:[%s301] sm:$0xff]
        %v710 = vld [vmem:[%s301 + $0x8] sm:$0xff]
        %v711 = vld [vmem:[%s301 + $0x10] sm:$0xff]
        %v712 = vld [vmem:[%s301 + $0x18] sm:$0xff]
        %v713 = vld [vmem:[%s301 + $0x20] sm:$0xff]
        %v714 = vld [vmem:[%s301 + $0x28] sm:$0xff]
        %v715 = vld [vmem:[%s301 + $0x30] sm:$0xff]
        %v716 = vld [vmem:[%s301 + $0x38] sm:$0xff]
        %v717 = vmul.f32 %v709, %v638
        %v718 = vmul.f32 %v710, %v648
        %v719 = vmul.f32 %v711, %v658
        %v720 = vmul.f32 %v712, %v668
        %v721 = vmul.f32 %v713, %v678
        %v722 = vmul.f32 %v714, %v688
        %v723 = vmul.f32 %v715, %v698
        %v724 = vmul.f32 %v716, %v708
        %v725 = vld [vmem:[%s307] sm:$0xff]
        %v726 = vld [vmem:[%s307 + $0x8] sm:$0xff]
        %v727 = vld [vmem:[%s307 + $0x10] sm:$0xff]
        %v728 = vld [vmem:[%s307 + $0x18] sm:$0xff]
        %v729 = vld [vmem:[%s307 + $0x20] sm:$0xff]
        %v730 = vld [vmem:[%s307 + $0x28] sm:$0xff]
        %v731 = vld [vmem:[%s307 + $0x30] sm:$0xff]
        %v732 = vld [vmem:[%s307 + $0x38] sm:$0xff]
        %v733 = vmul.f32 %v511, %v717
        %v734 = vmul.f32 %v512, %v718
        %v735 = vmul.f32 %v513, %v719
        %v736 = vmul.f32 %v514, %v720
        %v737 = vmul.f32 %v515, %v721
        %v738 = vmul.f32 %v516, %v722
        %v739 = vmul.f32 %v517, %v723
        %v740 = vmul.f32 %v518, %v724
        %v741 = vsub.f32 %v725, %v733
        %v742 = vsub.f32 %v726, %v734
        %v743 = vsub.f32 %v727, %v735
        %v744 = vsub.f32 %v728, %v736
        %v745 = vsub.f32 %v729, %v737
        %v746 = vsub.f32 %v730, %v738
        %v747 = vsub.f32 %v731, %v739
        %v748 = vsub.f32 %v732, %v740
        %750 = vset.pattern.permute.xlu0 0
        %751 = vperm.xlu0 %750, %v717
        %v752 = vpop.permute.xlu0 %751
        %755 = vset.pattern.permute.xlu0 0
        %756 = vperm.xlu0 %755, %v718
        %v757 = vpop.permute.xlu0 %756
        %760 = vset.pattern.permute.xlu0 0
        %761 = vperm.xlu0 %760, %v719
        %v762 = vpop.permute.xlu0 %761
        %765 = vset.pattern.permute.xlu0 0
        %766 = vperm.xlu0 %765, %v720
        %v767 = vpop.permute.xlu0 %766
        %770 = vset.pattern.permute.xlu0 0
        %771 = vperm.xlu0 %770, %v721
        %v772 = vpop.permute.xlu0 %771
        %775 = vset.pattern.permute.xlu0 0
        %776 = vperm.xlu0 %775, %v722
        %v777 = vpop.permute.xlu0 %776
        %780 = vset.pattern.permute.xlu0 0
        %781 = vperm.xlu0 %780, %v723
        %v782 = vpop.permute.xlu0 %781
        %785 = vset.pattern.permute.xlu0 0
        %786 = vperm.xlu0 %785, %v724
        %v787 = vpop.permute.xlu0 %786
        %v789 = vmul.f32 %v311, %v752
        %v790 = vmul.f32 %v312, %v752
        %v791 = vmul.f32 %v313, %v757
        %v792 = vmul.f32 %v314, %v757
        %v793 = vmul.f32 %v315, %v762
        %v794 = vmul.f32 %v316, %v762
        %v795 = vmul.f32 %v317, %v767
        %v796 = vmul.f32 %v318, %v767
        %v797 = vmul.f32 %v319, %v772
        %v798 = vmul.f32 %v320, %v772
        %v799 = vmul.f32 %v321, %v777
        %v800 = vmul.f32 %v322, %v777
        %v801 = vmul.f32 %v323, %v782
        %v802 = vmul.f32 %v324, %v782
        %v803 = vmul.f32 %v325, %v787
        %v804 = vmul.f32 %v326, %v787
        %806 = vset.pattern.permute.xlu0 0
        %807 = vperm.xlu0 %806, %v741
        %v808 = vpop.permute.xlu0 %807
        %811 = vset.pattern.permute.xlu0 0
        %812 = vperm.xlu0 %811, %v742
        %v813 = vpop.permute.xlu0 %812
        %816 = vset.pattern.permute.xlu0 0
        %817 = vperm.xlu0 %816, %v743
        %v818 = vpop.permute.xlu0 %817
        %821 = vset.pattern.permute.xlu0 0
        %822 = vperm.xlu0 %821, %v744
        %v823 = vpop.permute.xlu0 %822
        %826 = vset.pattern.permute.xlu0 0
        %827 = vperm.xlu0 %826, %v745
        %v828 = vpop.permute.xlu0 %827
        %831 = vset.pattern.permute.xlu0 0
        %832 = vperm.xlu0 %831, %v746
        %v833 = vpop.permute.xlu0 %832
        %836 = vset.pattern.permute.xlu0 0
        %837 = vperm.xlu0 %836, %v747
        %v838 = vpop.permute.xlu0 %837
        %841 = vset.pattern.permute.xlu0 0
        %842 = vperm.xlu0 %841, %v748
        %v843 = vpop.permute.xlu0 %842
        %v845 = vadd.f32 %v789, %v808
        %v846 = vadd.f32 %v790, %v808
        %v847 = vadd.f32 %v791, %v813
        %v848 = vadd.f32 %v792, %v813
        %v849 = vadd.f32 %v793, %v818
        %v850 = vadd.f32 %v794, %v818
        %v851 = vadd.f32 %v795, %v823
        %v852 = vadd.f32 %v796, %v823
        %v853 = vadd.f32 %v797, %v828
        %v854 = vadd.f32 %v798, %v828
        %v855 = vadd.f32 %v799, %v833
        %v856 = vadd.f32 %v800, %v833
        %v857 = vadd.f32 %v801, %v838
        %v858 = vadd.f32 %v802, %v838
        %v859 = vadd.f32 %v803, %v843
        %v860 = vadd.f32 %v804, %v843
        %861 = vst [vmem:[%s294] sm:$0xff] %v845
        %862 = vst [vmem:[%s294 + $0x8] sm:$0xff] %v846
        %863 = vst [vmem:[%s294 + $0x10] sm:$0xff] %v847
        %864 = vst [vmem:[%s294 + $0x18] sm:$0xff] %v848
        %865 = vst [vmem:[%s294 + $0x20] sm:$0xff] %v849
        %866 = vst [vmem:[%s294 + $0x28] sm:$0xff] %v850
        %867 = vst [vmem:[%s294 + $0x30] sm:$0xff] %v851
        %868 = vst [vmem:[%s294 + $0x38] sm:$0xff] %v852
        %869 = vst [vmem:[%s294 + $0x40] sm:$0xff] %v853
        %870 = vst [vmem:[%s294 + $0x48] sm:$0xff] %v854
        %871 = vst [vmem:[%s294 + $0x50] sm:$0xff] %v855
        %872 = vst [vmem:[%s294 + $0x58] sm:$0xff] %v856
        %873 = vst [vmem:[%s294 + $0x60] sm:$0xff] %v857
        %874 = vst [vmem:[%s294 + $0x68] sm:$0xff] %v858
        %875 = vst [vmem:[%s294 + $0x70] sm:$0xff] %v859
        %876 = vst [vmem:[%s294 + $0x78] sm:$0xff] %v860
        %s877 = sand.u32 %s166, 1
        %s878 = scalar_lea.sflag [#allocation4], %s877
        %s879 = sand.u32 %s166, 1
        %s880 = smul.addr %s879, 128
        %s881 = scalar_lea.vmem [#allocation5], %s880
        // Predicated region
        $region45: #{tpu_custom_call.1} parent=39 // pred_check
          %p882 = pneg %p176
        $region46: #{tpu_custom_call.1} parent=39 // pred_check_branch
          %884 = sbr.rel (%p882) target = $region48
        $region47: #{tpu_custom_call.1} parent=39 // pred_region
          %s885 = sadd.s32 %s26, %s27
          %s886 = smul.u32 8, %s885
          %888 = vsyncadd %s878, 0
          %s889 = smul.addr %s886, 2
          %s890 = smul.addr %s889, 8
          %s891 = scalar_lea.hbm %s5, %s890
          %s892 = sshll.u32 %s881, 4
          %s893 = int_to_ptr.vmem [resolvable:$true] %s892
          %s894 = sshll.u32 %s891, 4
          %s895 = int_to_ptr.hbm [resolvable:$true] %s894
          %900 = dma.vmem_to_hbm [thread:$0]  %s893, 2048, %s895, %s878, 256, 256, 16
        $region48: #{tpu_custom_call.1} parent=39 // pred_fallthru
          _
      $region40: #{tpu_custom_call.1} parent=5 // pred_fallthru
        _
      %p901 = scmp.le.s32.totalorder 2, %s17
      // Predicated region
      $region49: #{tpu_custom_call.1} parent=5 // pred_check
        %p902 = pneg %p901
      $region50: #{tpu_custom_call.1} parent=5 // pred_check_branch
        %904 = sbr.rel (%p902) target = $region52
      $region51: #{tpu_custom_call.1} parent=5 // pred_region
        %s905 = ssub.s32 %s17, 2
        // Predicated region
        $region53: #{tpu_custom_call.1} parent=51 // pred_check
          %p906 = pneg %p182
        $region54: #{tpu_custom_call.1} parent=51 // pred_check_branch
          %908 = sbr.rel (%p906) target = $region56
        $region55: #{tpu_custom_call.1} parent=51 // pred_region
          %s909 = sand.u32 %s167, 1
          %s910 = scalar_lea.sflag [#allocation4], %s909
          %s911 = sand.u32 %s167, 1
          %s912 = smul.addr %s911, 128
          %s913 = scalar_lea.vmem [#allocation5], %s912
          %915 = dma.done %s910, 2048
        $region56: #{tpu_custom_call.1} parent=51 // pred_fallthru
          _
      $region52: #{tpu_custom_call.1} parent=5 // pred_fallthru
        _
    $region6: #{tpu_custom_call.1} parent=1 // loop_footer
      %s21 = sadd.s32 1, %s17
    $region7: #{tpu_custom_call.1} parent=1 // loop_footer_branch
      %16 = sbr.rel target = $region3
    $region8: #{tpu_custom_call.1} parent=1 // loop_exit
      _
    %916 = vsyncpa [#allocation3], 1
    %s917 = scalar_lea.sflag [#allocation3], 1
    %918 = vsyncpa %s917, 1
    %919 = vsyncpa [#allocation4], 1
    %s920 = scalar_lea.sflag [#allocation4], 1
    %921 = vsyncpa %s920, 1

</llo_original>
